<compile_context>
chip_gen: v7x
topology: tpu7x:2x2x1
jax: 0.10.0
libtpu: 0.0.40
codegen_flags: <defaults>
</compile_context>

<pallas_src>
import math
import functools

import jax
import jax.numpy as jnp
from jax import lax
from jax.experimental import pallas as pl
from jax.experimental.pallas import tpu as pltpu


# --------------------------- hardware-aware sizing ----------------------------

@functools.lru_cache(maxsize=None)
def _vmem_capacity_bytes():
    """Physical VMEM per TensorCore (128 MiB on v5e/v6e, 64 MiB on v7x)."""
    try:
        cap = int(getattr(pltpu.get_tpu_info(), "vmem_capacity_bytes", 0))
        if cap > 0:
            return cap
    except Exception:
        pass
    return 64 * 1024 * 1024           # conservative fallback (v7x-sized)


def _vmem_limit_bytes():
    # ~3/4 of physical VMEM: ~96 MiB on v5e/v6e, ~48 MiB on v7x.
    return min(int(_vmem_capacity_bytes() * 3 // 4), 96 * 1024 * 1024)


def _big_vmem():
    return _vmem_capacity_bytes() >= (100 << 20)   # v5e / v6e (128 MiB)


def _sublane(dtype):
    """Sublane packing granularity: 8 (f32), 16 (bf16), 32 (int8/fp8)."""
    return max(8, 256 // (jnp.dtype(dtype).itemsize * 8))


def _pick_tile(dim, target, align):
    """Largest tile <= target that divides `dim` and is a multiple of `align`.

    Falls back to the full dimension (full-extent blocks need no alignment);
    if that ever blows the VMEM budget the vmem_limit turns it into a compile
    error instead of silent corruption."""
    if dim <= target:
        return dim
    t = (min(target, dim) // align) * align
    while t >= align:
        if dim % t == 0:
            return t
        t -= align
    return dim


def _proj_tiles(M, K, N, dtype):
    sub = _sublane(dtype)
    tn_target = 512 if _big_vmem() else 256   # bigger weight reuse on v5e/v6e
    tm = _pick_tile(M, 256, sub)
    tn = _pick_tile(N, tn_target, 128)
    tk = _pick_tile(K, 512, 128)
    return tm, tn, tk


def _attn_tiles(S, dtype):
    sub = _sublane(dtype)
    tq_target = 512                            # arithmetic intensity ~ tq/2
    tkv_target = 512 if _big_vmem() else 256
    tq = _pick_tile(S, tq_target, sub)
    tkv = _pick_tile(S, tkv_target, 128)       # lane dim of the score tile
    return tq, tkv


# ------------------------------ Pallas kernels --------------------------------

def _linear_kernel(x_ref, w_ref, b_ref, o_ref, acc_ref):
    """One (tm, tn) output tile of y = x @ w + b, accumulated over the K axis."""
    kk = pl.program_id(2)

    @pl.when(kk == 0)
    def _init():
        acc_ref[...] = jnp.zeros_like(acc_ref)

    acc_ref[...] += jnp.dot(x_ref[...], w_ref[...],
                            preferred_element_type=jnp.float32)

    @pl.when(kk == pl.num_programs(2) - 1)
    def _finalize():
        # bias added once, on the final reduction step only
        o_ref[...] = (acc_ref[...] + b_ref[...]).astype(o_ref.dtype)


def _qkv_proj_kernel(xk_ref, xq_ref, xv_ref, w_ref, b_ref,
                     ok_ref, oq_ref, ov_ref, acc_ref, *, q_scale):
    """Fused K/Q/V projections: three matmuls share one launch / grid sweep."""
    kk = pl.program_id(2)

    @pl.when(kk == 0)
    def _init():
        acc_ref[...] = jnp.zeros_like(acc_ref)

    acc_ref[0] = acc_ref[0] + jnp.dot(xk_ref[...], w_ref[0],
                                      preferred_element_type=jnp.float32)
    acc_ref[1] = acc_ref[1] + jnp.dot(xq_ref[...], w_ref[1],
                                      preferred_element_type=jnp.float32)
    acc_ref[2] = acc_ref[2] + jnp.dot(xv_ref[...], w_ref[2],
                                      preferred_element_type=jnp.float32)

    @pl.when(kk == pl.num_programs(2) - 1)
    def _finalize():
        ok_ref[...] = (acc_ref[0] + b_ref[0]).astype(ok_ref.dtype)
        # 1/sqrt(d_h) folded into Q here: one multiply per element, once.
        # The attention kernel never scales its (tq, tk) score tiles.
        oq_ref[...] = ((acc_ref[1] + b_ref[1]) * q_scale).astype(oq_ref.dtype)
        ov_ref[...] = (acc_ref[2] + b_ref[2]).astype(ov_ref.dtype)


def _flash_mha_kernel(q_ref, k_ref, v_ref, o_ref, m_scr, l_scr, acc_scr,
                      *, num_head):
    """Flash-style online-softmax attention.

    One grid step handles ALL heads of one (batch, q-tile, kv-tile):
      q_ref, k_ref, v_ref : (tq, d) / (tk, d) / (tk, d)  with d = H * Dh
      o_ref               : (tq, d)  -- lane-dense, heads concatenated
      m/l/acc scratch     : per-head f32 running stats, persist over the KV axis
    Q is expected pre-scaled by 1/sqrt(d_h) (done in the QKV projection).
    """
    kv_idx = pl.program_id(2)
    d = q_ref.shape[-1]
    d_h = d // num_head

    @pl.when(kv_idx == 0)
    def _init():
        m_scr[...] = jnp.full(m_scr.shape, -jnp.inf, m_scr.dtype)
        l_scr[...] = jnp.zeros_like(l_scr)
        acc_scr[...] = jnp.zeros_like(acc_scr)

    # Single lane-dense load of each operand tile; per-head column views after.
    q_all = q_ref[...]
    k_all = k_ref[...]
    v_all = v_ref[...]

    # (tk, 1) ones column: softmax row-sum runs on the MXU, not the XLU.
    ones_col = jnp.ones((k_all.shape[0], 1), jnp.float32)

    # TODO(synk): for num_head >= 8 switch to lax.fori_loop over heads
    #   (pl.ds column slices) to bound live ranges / code size.
    # TODO(synk): when d_h is not a multiple of 128, group heads into 128-lane
    #   chunks for the exp/rescale path to avoid per-head lane shuffles.
    # TODO(synk): on v6e/v7x a bf16 exp would double EUP throughput (keep l in
    #   f32); skipped here to stay exact on v5e (no bf16 EUP).
    for h in range(num_head):
        lo = h * d_h
        hi = lo + d_h
        qh = q_all[:, lo:hi]             # (tq, Dh), pre-scaled
        kh = k_all[:, lo:hi]             # (tk, Dh)
        vh = v_all[:, lo:hi]             # (tk, Dh)

        # scores: contract the last dims directly (no k.T transpose)
        s = lax.dot_general(
            qh, kh,
            dimension_numbers=(((1,), (1,)), ((), ())),
            preferred_element_type=jnp.float32)                  # (tq, tk) f32

        m_prev = m_scr[h]                                        # (tq, 1)
        m_new = jnp.maximum(m_prev, jnp.max(s, axis=-1, keepdims=True))
        alpha = jnp.exp(m_prev - m_new)                          # (tq, 1)
        p = jnp.exp(s - m_new)                                   # (tq, tk) f32

        row_sum = lax.dot_general(                               # MXU row-sum
            p, ones_col,
            dimension_numbers=(((1,), (0,)), ((), ())),
            preferred_element_type=jnp.float32)                  # (tq, 1)
        l_scr[h] = alpha * l_scr[h] + row_sum

        pv = lax.dot_general(
            p.astype(vh.dtype), vh,
            dimension_numbers=(((1,), (0,)), ((), ())),
            preferred_element_type=jnp.float32)                  # (tq, Dh)
        acc_scr[h] = alpha * acc_scr[h] + pv
        m_scr[h] = m_new

    @pl.when(kv_idx == pl.num_programs(2) - 1)
    def _finalize():
        # Per-head column stores straight into the lane-dense (tq, d) output
        # tile: no jnp.concatenate temp, result is already in [B, S, d] layout.
        for h in range(num_head):
            inv_l = pl.reciprocal(l_scr[h], approx=True)         # EUP vrcp
            o_ref[:, h * d_h:(h + 1) * d_h] = (
                acc_scr[h] * inv_l).astype(o_ref.dtype)


# ------------------------------ JAX wrappers -----------------------------------

def pallas_linear(x, w, b):
    """y = x @ w + b.  x: [M, K], w: [K, N], b: [N]."""
    M, K = x.shape
    N = w.shape[1]
    tm, tn, tk = _proj_tiles(M, K, N, x.dtype)
    grid = (M // tm, N // tn, K // tk)

    return pl.pallas_call(
        _linear_kernel,
        out_shape=jax.ShapeDtypeStruct((M, N), x.dtype),
        grid_spec=pltpu.PrefetchScalarGridSpec(
            num_scalar_prefetch=0,
            grid=grid,
            in_specs=[
                pl.BlockSpec((tm, tk), lambda i, j, kk: (i, kk)),
                pl.BlockSpec((tk, tn), lambda i, j, kk: (kk, j)),
                pl.BlockSpec((1, tn), lambda i, j, kk: (0, j)),
            ],
            out_specs=pl.BlockSpec((tm, tn), lambda i, j, kk: (i, j)),
            scratch_shapes=[pltpu.VMEM((tm, tn), jnp.float32)],
        ),
        compiler_params=pltpu.CompilerParams(
            dimension_semantics=("parallel", "parallel", "arbitrary"),
            vmem_limit_bytes=_vmem_limit_bytes()),
    )(x, w, b.reshape(1, N))


def pallas_qkv_projection(xk, xq, xv, w_stack, b_stack, q_scale):
    """Fused K/Q/V projections, with 1/sqrt(d_h) folded into the Q output.

    xk, xq, xv : [M, d]   (inputs to linear_layers[0..2])
    w_stack    : [3, d, d]
    b_stack    : [3, 1, d]
    returns (k, q_scaled, v), each [M, d]
    """
    M, K = xk.shape
    N = w_stack.shape[2]
    tm, tn, tk = _proj_tiles(M, K, N, xk.dtype)
    grid = (M // tm, N // tn, K // tk)

    x_spec = pl.BlockSpec((tm, tk), lambda i, j, kk: (i, kk))
    o_spec = pl.BlockSpec((tm, tn), lambda i, j, kk: (i, j))
    out_sds = jax.ShapeDtypeStruct((M, N), xk.dtype)

    kernel = functools.partial(_qkv_proj_kernel, q_scale=q_scale)
    return pl.pallas_call(
        kernel,
        out_shape=(out_sds, out_sds, out_sds),
        grid_spec=pltpu.PrefetchScalarGridSpec(
            num_scalar_prefetch=0,
            grid=grid,
            in_specs=[
                x_spec, x_spec, x_spec,
                pl.BlockSpec((3, tk, tn), lambda i, j, kk: (0, kk, j)),
                pl.BlockSpec((3, 1, tn), lambda i, j, kk: (0, 0, j)),
            ],
            out_specs=(o_spec, o_spec, o_spec),
            scratch_shapes=[pltpu.VMEM((3, tm, tn), jnp.float32)],
        ),
        compiler_params=pltpu.CompilerParams(
            dimension_semantics=("parallel", "parallel", "arbitrary"),
            vmem_limit_bytes=_vmem_limit_bytes()),
    )(xk, xq, xv, w_stack, b_stack)


def pallas_attention(q, k, v, num_head):
    """Multi-head scaled dot-product attention (flash-style, no mask).

    q, k, v : [B, S, d] with heads packed in the last dim (d = H * Dh);
              q is expected pre-scaled by 1/sqrt(Dh).
    returns : [B, S, d] with heads concatenated in the last dim
    """
    B, S, d = q.shape
    d_h = d // num_head
    tq, tk = _attn_tiles(S, q.dtype)
    # (batch, q-tile) axes are "parallel": B*(S/tq) grid steps shard across
    # the two v7x TensorCores; the KV axis carries the running softmax state.
    grid = (B, S // tq, S // tk)

    kernel = functools.partial(_flash_mha_kernel, num_head=num_head)
    return pl.pallas_call(
        kernel,
        out_shape=jax.ShapeDtypeStruct((B, S, d), q.dtype),
        grid_spec=pltpu.PrefetchScalarGridSpec(
            num_scalar_prefetch=0,
            grid=grid,
            in_specs=[
                pl.BlockSpec((None, tq, d), lambda b, qi, ki: (b, qi, 0)),
                pl.BlockSpec((None, tk, d), lambda b, qi, ki: (b, ki, 0)),
                pl.BlockSpec((None, tk, d), lambda b, qi, ki: (b, ki, 0)),
            ],
            out_specs=pl.BlockSpec((None, tq, d), lambda b, qi, ki: (b, qi, 0)),
            scratch_shapes=[
                pltpu.VMEM((num_head, tq, 1), jnp.float32),    # running max m
                pltpu.VMEM((num_head, tq, 1), jnp.float32),    # running sum l
                pltpu.VMEM((num_head, tq, d_h), jnp.float32),  # accumulator
            ],
        ),
        compiler_params=pltpu.CompilerParams(
            dimension_semantics=("parallel", "parallel", "arbitrary"),
            vmem_limit_bytes=_vmem_limit_bytes()),
    )(q, k, v)


# ----------------------------- MultiHeadAttention -----------------------------

def init_mha_params(key, d, dtype=jnp.float32):
    """PyTorch nn.Linear default init: U(-1/sqrt(fan_in), 1/sqrt(fan_in)).

    Weights are stored [d_in, d_out] (transposed vs. torch) and the three QKV
    projection weights/biases are stacked for the fused kernel.
    Order matches linear_layers: [0] -> K, [1] -> Q, [2] -> V.
    """
    bound = 1.0 / math.sqrt(d)
    k1, k2, k3, k4 = jax.random.split(key, 4)
    return {
        "qkv_w": jax.random.uniform(k1, (3, d, d), dtype, -bound, bound),
        "qkv_b": jax.random.uniform(k2, (3, 1, d), dtype, -bound, bound),
        "out_w": jax.random.uniform(k3, (d, d), dtype, -bound, bound),
        "out_b": jax.random.uniform(k4, (d,), dtype, -bound, bound),
    }


def multi_head_attention_forward(params, K, Q, V, num_head):
    """Mirrors MultiHeadAttention.forward(K, Q, V, mask=None) in eval mode."""
    B, S, d = K.shape
    M = B * S
    d_h = d // num_head
    q_scale = 1.0 / math.sqrt(d_h)

    # Fused K/Q/V projections (single pallas_call, heads stay packed in d).
    # The Q output comes back pre-scaled by 1/sqrt(d_h).
    k_p, q_p, v_p = pallas_qkv_projection(
        K.reshape(M, d), Q.reshape(M, d), V.reshape(M, d),
        params["qkv_w"], params["qkv_b"], q_scale)

    # Flash attention directly on the [B, S, d] layout; output is already
    # the "transpose(1,2).view(B, S, d)" layout of the torch reference.
    attn = pallas_attention(q_p.reshape(B, S, d),
                            k_p.reshape(B, S, d),
                            v_p.reshape(B, S, d),
                            num_head)                          # [B, S, d]

    out = pallas_linear(attn.reshape(M, d), params["out_w"], params["out_b"])
    return out.reshape(B, S, d)


# ------------------------------------ main -------------------------------------

if __name__ == "__main__":
    num_head = 4
    d = 32
    batch = 2
    seq = 8
    dtype = jnp.float32   # pass bf16 inputs/params to use the bf16 MXU path

    root = jax.random.PRNGKey(0)
    k_param, k_K, k_Q, k_V = jax.random.split(root, 4)

    params = init_mha_params(k_param, d, dtype)
    K = jax.random.normal(k_K, (batch, seq, d), dtype)
    Q = jax.random.normal(k_Q, (batch, seq, d), dtype)
    V = jax.random.normal(k_V, (batch, seq, d), dtype)

    out = multi_head_attention_forward(params, K, Q, V, num_head)
    jax.block_until_ready(out)

    # Plain-JAX reference (identical math, exact softmax division).
    def ref_forward(params, K, Q, V):
        B, S, _ = K.shape
        d_h = d // num_head

        def proj(x, i):
            y = x.reshape(B * S, d) @ params["qkv_w"][i] + params["qkv_b"][i, 0]
            return y.reshape(B, S, num_head, d_h).transpose(0, 2, 1, 3)

        k = proj(K, 0); q = proj(Q, 1); v = proj(V, 2)
        s = jnp.einsum("bhqd,bhkd->bhqk", q, k) / math.sqrt(d_h)
        p = jax.nn.softmax(s, axis=-1)
        a = jnp.einsum("bhqk,bhkd->bhqd", p, v)
        a = a.transpose(0, 2, 1, 3).reshape(B * S, d)
        return (a @ params["out_w"] + params["out_b"]).reshape(B, S, d)

    ref = ref_forward(params, K, Q, V)
    # Tolerance accounts for the approximate (EUP) reciprocal in the softmax
    # normalization; everything else accumulates in f32.
    assert jnp.allclose(out, ref, atol=2e-3, rtol=2e-3), "mismatch vs reference"

    print("KERNEL_OK")
</pallas_src>

<mosaic_0001>
module attributes {stable_mosaic.version = 11 : i64} {
  func.func @_qkv_proj_kernel(%arg0: i32, %arg1: i32, %arg2: i32, %arg3: memref<16x32xf32, #tpu.memory_space<vmem>>, %arg4: memref<16x32xf32, #tpu.memory_space<vmem>>, %arg5: memref<16x32xf32, #tpu.memory_space<vmem>>, %arg6: memref<3x32x32xf32, #tpu.memory_space<vmem>>, %arg7: memref<3x1x32xf32, #tpu.memory_space<vmem>>, %arg8: memref<16x32xf32, #tpu.memory_space<vmem>>, %arg9: memref<16x32xf32, #tpu.memory_space<vmem>>, %arg10: memref<16x32xf32, #tpu.memory_space<vmem>>, %arg11: memref<3x16x32xf32, #tpu.memory_space<vmem>>) attributes {dimension_semantics = [#tpu.dimension_semantics<parallel>, #tpu.dimension_semantics<parallel>, #tpu.dimension_semantics<arbitrary>], iteration_bounds = array<i64: 1, 1, 1>, scalar_prefetch = 0 : i64, scratch_operands = 1 : i64, tpu.core_type = #tpu.core_type<tc>, window_params = [{transform_indices = @transform_0, window_bounds = array<i64: 16, 32>}, {transform_indices = @transform_1, window_bounds = array<i64: 16, 32>}, {transform_indices = @transform_2, window_bounds = array<i64: 16, 32>}, {transform_indices = @transform_3, window_bounds = array<i64: 3, 32, 32>}, {transform_indices = @transform_4, window_bounds = array<i64: 3, 1, 32>}, {transform_indices = @transform_5, window_bounds = array<i64: 16, 32>}, {transform_indices = @transform_6, window_bounds = array<i64: 16, 32>}, {transform_indices = @transform_7, window_bounds = array<i64: 16, 32>}]} {
    %c0_i32 = arith.constant 0 : i32
    %0 = arith.cmpi eq, %arg2, %c0_i32 : i32
    %1 = arith.extui %0 : i1 to i32
    %c0_i32_0 = arith.constant 0 : i32
    %2 = arith.cmpi ne, %1, %c0_i32_0 : i32
    scf.if %2 {
      %cst_35 = arith.constant 0.000000e+00 : f32
      %36 = vector.broadcast %cst_35 : f32 to vector<3x16x32xf32>
      %c0_36 = arith.constant 0 : index
      %c0_37 = arith.constant 0 : index
      %c0_38 = arith.constant 0 : index
      %37 = vector.load %arg11[%c0_36, %c0_37, %c0_38] : memref<3x16x32xf32, #tpu.memory_space<vmem>>, vector<3x16x32xf32>
      tpu.vector_store %arg11[%c0_36, %c0_37, %c0_38], %36 {strides = array<i32>} : memref<3x16x32xf32, #tpu.memory_space<vmem>>, vector<3x16x32xf32>,
    } else {
    }
    %c0 = arith.constant 0 : index
    %c0_1 = arith.constant 0 : index
    %c0_2 = arith.constant 0 : index
    %3 = vector.load %arg11[%c0, %c0_1, %c0_2] : memref<3x16x32xf32, #tpu.memory_space<vmem>>, vector<1x16x32xf32>
    %4 = vector.shape_cast %3 : vector<1x16x32xf32> to vector<16x32xf32>
    %c0_3 = arith.constant 0 : index
    %c0_4 = arith.constant 0 : index
    %5 = vector.load %arg3[%c0_3, %c0_4] : memref<16x32xf32, #tpu.memory_space<vmem>>, vector<16x32xf32>
    %c0_5 = arith.constant 0 : index
    %c0_6 = arith.constant 0 : index
    %c0_7 = arith.constant 0 : index
    %6 = vector.load %arg6[%c0_5, %c0_6, %c0_7] : memref<3x32x32xf32, #tpu.memory_space<vmem>>, vector<1x32x32xf32>
    %7 = vector.shape_cast %6 : vector<1x32x32xf32> to vector<32x32xf32>
    %cst = arith.constant dense<0.000000e+00> : vector<16x32xf32>
    %8 = tpu.matmul %5, %7, %cst {dimension_numbers = #tpu.dot_dimension_numbers<[1], [0], [0], [1], [0, 0, 1, 1], [], []>} : vector<16x32xf32>, vector<32x32xf32>, vector<16x32xf32> -> vector<16x32xf32>
    %9 = arith.addf %4, %8 : vector<16x32xf32>
    %c0_8 = arith.constant 0 : index
    %c0_9 = arith.constant 0 : index
    %c0_10 = arith.constant 0 : index
    %10 = vector.load %arg11[%c0_8, %c0_9, %c0_10] : memref<3x16x32xf32, #tpu.memory_space<vmem>>, vector<1x16x32xf32>
    %11 = vector.shape_cast %10 : vector<1x16x32xf32> to vector<16x32xf32>
    %12 = vector.shape_cast %9 : vector<16x32xf32> to vector<1x16x32xf32>
    tpu.vector_store %arg11[%c0_8, %c0_9, %c0_10], %12 {strides = array<i32>} : memref<3x16x32xf32, #tpu.memory_space<vmem>>, vector<1x16x32xf32>,
    %c1 = arith.constant 1 : index
    %c0_11 = arith.constant 0 : index
    %c0_12 = arith.constant 0 : index
    %13 = vector.load %arg11[%c1, %c0_11, %c0_12] : memref<3x16x32xf32, #tpu.memory_space<vmem>>, vector<1x16x32xf32>
    %14 = vector.shape_cast %13 : vector<1x16x32xf32> to vector<16x32xf32>
    %c0_13 = arith.constant 0 : index
    %c0_14 = arith.constant 0 : index
    %15 = vector.load %arg4[%c0_13, %c0_14] : memref<16x32xf32, #tpu.memory_space<vmem>>, vector<16x32xf32>
    %c1_15 = arith.constant 1 : index
    %c0_16 = arith.constant 0 : index
    %c0_17 = arith.constant 0 : index
    %16 = vector.load %arg6[%c1_15, %c0_16, %c0_17] : memref<3x32x32xf32, #tpu.memory_space<vmem>>, vector<1x32x32xf32>
    %17 = vector.shape_cast %16 : vector<1x32x32xf32> to vector<32x32xf32>
    %cst_18 = arith.constant dense<0.000000e+00> : vector<16x32xf32>
    %18 = tpu.matmul %15, %17, %cst_18 {dimension_numbers = #tpu.dot_dimension_numbers<[1], [0], [0], [1], [0, 0, 1, 1], [], []>} : vector<16x32xf32>, vector<32x32xf32>, vector<16x32xf32> -> vector<16x32xf32>
    %19 = arith.addf %14, %18 : vector<16x32xf32>
    %c1_19 = arith.constant 1 : index
    %c0_20 = arith.constant 0 : index
    %c0_21 = arith.constant 0 : index
    %20 = vector.load %arg11[%c1_19, %c0_20, %c0_21] : memref<3x16x32xf32, #tpu.memory_space<vmem>>, vector<1x16x32xf32>
    %21 = vector.shape_cast %20 : vector<1x16x32xf32> to vector<16x32xf32>
    %22 = vector.shape_cast %19 : vector<16x32xf32> to vector<1x16x32xf32>
    tpu.vector_store %arg11[%c1_19, %c0_20, %c0_21], %22 {strides = array<i32>} : memref<3x16x32xf32, #tpu.memory_space<vmem>>, vector<1x16x32xf32>,
    %c2 = arith.constant 2 : index
    %c0_22 = arith.constant 0 : index
    %c0_23 = arith.constant 0 : index
    %23 = vector.load %arg11[%c2, %c0_22, %c0_23] : memref<3x16x32xf32, #tpu.memory_space<vmem>>, vector<1x16x32xf32>
    %24 = vector.shape_cast %23 : vector<1x16x32xf32> to vector<16x32xf32>
    %c0_24 = arith.constant 0 : index
    %c0_25 = arith.constant 0 : index
    %25 = vector.load %arg5[%c0_24, %c0_25] : memref<16x32xf32, #tpu.memory_space<vmem>>, vector<16x32xf32>
    %c2_26 = arith.constant 2 : index
    %c0_27 = arith.constant 0 : index
    %c0_28 = arith.constant 0 : index
    %26 = vector.load %arg6[%c2_26, %c0_27, %c0_28] : memref<3x32x32xf32, #tpu.memory_space<vmem>>, vector<1x32x32xf32>
    %27 = vector.shape_cast %26 : vector<1x32x32xf32> to vector<32x32xf32>
    %cst_29 = arith.constant dense<0.000000e+00> : vector<16x32xf32>
    %28 = tpu.matmul %25, %27, %cst_29 {dimension_numbers = #tpu.dot_dimension_numbers<[1], [0], [0], [1], [0, 0, 1, 1], [], []>} : vector<16x32xf32>, vector<32x32xf32>, vector<16x32xf32> -> vector<16x32xf32>
    %29 = arith.addf %24, %28 : vector<16x32xf32>
    %c2_30 = arith.constant 2 : index
    %c0_31 = arith.constant 0 : index
    %c0_32 = arith.constant 0 : index
    %30 = vector.load %arg11[%c2_30, %c0_31, %c0_32] : memref<3x16x32xf32, #tpu.memory_space<vmem>>, vector<1x16x32xf32>
    %31 = vector.shape_cast %30 : vector<1x16x32xf32> to vector<16x32xf32>
    %32 = vector.shape_cast %29 : vector<16x32xf32> to vector<1x16x32xf32>
    tpu.vector_store %arg11[%c2_30, %c0_31, %c0_32], %32 {strides = array<i32>} : memref<3x16x32xf32, #tpu.memory_space<vmem>>, vector<1x16x32xf32>,
    %c0_i32_33 = arith.constant 0 : i32
    %33 = arith.cmpi eq, %arg2, %c0_i32_33 : i32
    %34 = arith.extui %33 : i1 to i32
    %c0_i32_34 = arith.constant 0 : i32
    %35 = arith.cmpi ne, %34, %c0_i32_34 : i32
    scf.if %35 {
      %c0_35 = arith.constant 0 : index
      %c0_36 = arith.constant 0 : index
      %c0_37 = arith.constant 0 : index
      %36 = vector.load %arg11[%c0_35, %c0_36, %c0_37] : memref<3x16x32xf32, #tpu.memory_space<vmem>>, vector<1x16x32xf32>
      %37 = vector.shape_cast %36 : vector<1x16x32xf32> to vector<16x32xf32>
      %c0_38 = arith.constant 0 : index
      %c0_39 = arith.constant 0 : index
      %c0_40 = arith.constant 0 : index
      %38 = vector.load %arg7[%c0_38, %c0_39, %c0_40] : memref<3x1x32xf32, #tpu.memory_space<vmem>>, vector<1x1x32xf32>
      %39 = vector.shape_cast %38 : vector<1x1x32xf32> to vector<1x32xf32>
      %40 = vector.broadcast %39 : vector<1x32xf32> to vector<16x32xf32>
      %41 = arith.addf %37, %40 : vector<16x32xf32>
      %c0_41 = arith.constant 0 : index
      %c0_42 = arith.constant 0 : index
      %42 = vector.load %arg8[%c0_41, %c0_42] : memref<16x32xf32, #tpu.memory_space<vmem>>, vector<16x32xf32>
      tpu.vector_store %arg8[%c0_41, %c0_42], %41 {strides = array<i32>} : memref<16x32xf32, #tpu.memory_space<vmem>>, vector<16x32xf32>,
      %c1_43 = arith.constant 1 : index
      %c0_44 = arith.constant 0 : index
      %c0_45 = arith.constant 0 : index
      %43 = vector.load %arg11[%c1_43, %c0_44, %c0_45] : memref<3x16x32xf32, #tpu.memory_space<vmem>>, vector<1x16x32xf32>
      %44 = vector.shape_cast %43 : vector<1x16x32xf32> to vector<16x32xf32>
      %c1_46 = arith.constant 1 : index
      %c0_47 = arith.constant 0 : index
      %c0_48 = arith.constant 0 : index
      %45 = vector.load %arg7[%c1_46, %c0_47, %c0_48] : memref<3x1x32xf32, #tpu.memory_space<vmem>>, vector<1x1x32xf32>
      %46 = vector.shape_cast %45 : vector<1x1x32xf32> to vector<1x32xf32>
      %47 = vector.broadcast %46 : vector<1x32xf32> to vector<16x32xf32>
      %48 = arith.addf %44, %47 : vector<16x32xf32>
      %cst_49 = arith.constant 0.353553385 : f32
      %49 = vector.broadcast %cst_49 : f32 to vector<16x32xf32>
      %50 = arith.mulf %48, %49 : vector<16x32xf32>
      %c0_50 = arith.constant 0 : index
      %c0_51 = arith.constant 0 : index
      %51 = vector.load %arg9[%c0_50, %c0_51] : memref<16x32xf32, #tpu.memory_space<vmem>>, vector<16x32xf32>
      tpu.vector_store %arg9[%c0_50, %c0_51], %50 {strides = array<i32>} : memref<16x32xf32, #tpu.memory_space<vmem>>, vector<16x32xf32>,
      %c2_52 = arith.constant 2 : index
      %c0_53 = arith.constant 0 : index
      %c0_54 = arith.constant 0 : index
      %52 = vector.load %arg11[%c2_52, %c0_53, %c0_54] : memref<3x16x32xf32, #tpu.memory_space<vmem>>, vector<1x16x32xf32>
      %53 = vector.shape_cast %52 : vector<1x16x32xf32> to vector<16x32xf32>
      %c2_55 = arith.constant 2 : index
      %c0_56 = arith.constant 0 : index
      %c0_57 = arith.constant 0 : index
      %54 = vector.load %arg7[%c2_55, %c0_56, %c0_57] : memref<3x1x32xf32, #tpu.memory_space<vmem>>, vector<1x1x32xf32>
      %55 = vector.shape_cast %54 : vector<1x1x32xf32> to vector<1x32xf32>
      %56 = vector.broadcast %55 : vector<1x32xf32> to vector<16x32xf32>
      %57 = arith.addf %53, %56 : vector<16x32xf32>
      %c0_58 = arith.constant 0 : index
      %c0_59 = arith.constant 0 : index
      %58 = vector.load %arg10[%c0_58, %c0_59] : memref<16x32xf32, #tpu.memory_space<vmem>>, vector<16x32xf32>
      tpu.vector_store %arg10[%c0_58, %c0_59], %57 {strides = array<i32>} : memref<16x32xf32, #tpu.memory_space<vmem>>, vector<16x32xf32>,
    } else {
    }
    return
  }
  func.func @transform_0(%arg0: i32, %arg1: i32, %arg2: i32) -> (i32, i32) {
    %c0_i32 = arith.constant 0 : i32
    return %arg0, %arg2 : i32, i32
  }
  func.func @transform_1(%arg0: i32, %arg1: i32, %arg2: i32) -> (i32, i32) {
    %c0_i32 = arith.constant 0 : i32
    return %arg0, %arg2 : i32, i32
  }
  func.func @transform_2(%arg0: i32, %arg1: i32, %arg2: i32) -> (i32, i32) {
    %c0_i32 = arith.constant 0 : i32
    return %arg0, %arg2 : i32, i32
  }
  func.func @transform_3(%arg0: i32, %arg1: i32, %arg2: i32) -> (i32, i32, i32) {
    %c0_i32 = arith.constant 0 : i32
    %c0_i32_0 = arith.constant 0 : i32
    return %c0_i32, %arg2, %arg1 : i32, i32, i32
  }
  func.func @transform_4(%arg0: i32, %arg1: i32, %arg2: i32) -> (i32, i32, i32) {
    %c0_i32 = arith.constant 0 : i32
    %c0_i32_0 = arith.constant 0 : i32
    %c0_i32_1 = arith.constant 0 : i32
    return %c0_i32, %c0_i32_0, %arg1 : i32, i32, i32
  }
  func.func @transform_5(%arg0: i32, %arg1: i32, %arg2: i32) -> (i32, i32) {
    %c0_i32 = arith.constant 0 : i32
    return %arg0, %arg1 : i32, i32
  }
  func.func @transform_6(%arg0: i32, %arg1: i32, %arg2: i32) -> (i32, i32) {
    %c0_i32 = arith.constant 0 : i32
    return %arg0, %arg1 : i32, i32
  }
  func.func @transform_7(%arg0: i32, %arg1: i32, %arg2: i32) -> (i32, i32) {
    %c0_i32 = arith.constant 0 : i32
    return %arg0, %arg1 : i32, i32
  }
}

</mosaic_0001>

<llo_original>
// kernel: tpu_custom_call.1
$region0: #{tpu_custom_call.1}
  #allocation0 [shape = 'u32[]', space=smem, size = 0x4, offset = 0x4, fixed_abs, tag = 'smem constant byte address 0x4 - core index']
  #allocation1 [shape = 'u32[144,128]{1,0:T(1,128)}', space=vmem, size = 0x12000, scoped, tag = 'internal scratch']
  #allocation2 [shape = 'f32[3,16,32]{2,1,0:T(8,128)}', space=vmem, size = 0x6000, scoped, tag = 'scratch operand']
  %s0 = inlined_call_operand.hbm [shape: f32[16,32], index: 0, kind: input, shape index: {}]
  %s1 = inlined_call_operand.hbm [shape: f32[16,32], index: 1, kind: input, shape index: {}]
  %s2 = inlined_call_operand.hbm [shape: f32[16,32], index: 2, kind: input, shape index: {}]
  %s3 = inlined_call_operand.hbm [shape: f32[3,32,32], index: 3, kind: input, shape index: {}]
  %s4 = inlined_call_operand.vmem [shape: f32[3,1,32], index: 4, kind: input, shape index: {}]
  %s5 = inlined_call_operand.hbm [shape: f32[16,32], index: 5, kind: output, shape index: {0}]
  %s6 = inlined_call_operand.hbm [shape: f32[16,32], index: 6, kind: output, shape index: {1}]
  %s7 = inlined_call_operand.hbm [shape: f32[16,32], index: 7, kind: output, shape index: {2}]
  %8 = xla_tuple %s5, %s6, %s7
  %s9 = sld [smem:[#allocation0]]
  $region70: #{tpu_custom_call.1} parent=0
    _
  %s11 = ssub.s32 1, %s9
  %s12 = scalar_select 0, %s11, %s9
  $region1: #{tpu_custom_call.1} parent=0
    #allocation3 [shape = 'u8[8192]{0}', space=vmem, size = 0x2000, scoped, tag = 'input window, operand 0, single buffered']
    #allocation4 [shape = 's32[1]{0}', space=sflag, size = 0x4, scoped, tag = 'scoped memory for tpu_custom_call.1']
    #allocation5 [shape = 's32[1]{0}', space=sflag, size = 0x4, scoped, tag = 'scoped memory for tpu_custom_call.1']
    #allocation6 [shape = 'u8[8192]{0}', space=vmem, size = 0x2000, scoped, tag = 'input window, operand 1, single buffered']
    #allocation7 [shape = 's32[1]{0}', space=sflag, size = 0x4, scoped, tag = 'scoped memory for tpu_custom_call.1']
    #allocation8 [shape = 'u8[8192]{0}', space=vmem, size = 0x2000, scoped, tag = 'input window, operand 2, single buffered']
    #allocation9 [shape = 'u8[49152]{0}', space=vmem, size = 0xc000, scoped, tag = 'input window, operand 3, single buffered']
    #allocation10 [shape = 's32[1]{0}', space=sflag, size = 0x4, scoped, tag = 'scoped memory for tpu_custom_call.1']
    #allocation11 [shape = 'u8[8192]{0}', space=vmem, size = 0x2000, scoped, tag = 'output window, operand 0, single buffered']
    #allocation12 [shape = 'u8[8192]{0}', space=vmem, size = 0x2000, scoped, tag = 'output window, operand 1, single buffered']
    #allocation13 [shape = 's32[1]{0}', space=sflag, size = 0x4, scoped, tag = 'scoped memory for tpu_custom_call.1']
    #allocation14 [shape = 'u8[8192]{0}', space=vmem, size = 0x2000, scoped, tag = 'output window, operand 2, single buffered']
    %13 = vsyncpa [#allocation4], 0
    %14 = vsyncpa [#allocation7], 0
    %15 = vsyncpa [#allocation10], 0
    %16 = vsyncpa [#allocation5], 0
    %17 = vsyncpa [#allocation13], 0
    // Predicated region
    $region2: #{tpu_custom_call.1} parent=1 // pred_check
      _
    $region3: #{tpu_custom_call.1} parent=1 // pred_check_branch
      %19 = sbr.rel (0) target = $region5
    $region4: #{tpu_custom_call.1} parent=1 // pred_region
      %s21 = ssub.s32 256, 256
      %22 = vsyncadd [#allocation4], %s21
      %s23 = sshll.u32 [#allocation3], 4
      %s24 = int_to_ptr.vmem [resolvable:$true] %s23
      %29 = dma.hbm_to_vmem [thread:$0]  %s0, 256, %s24, [#allocation4], 128, 128, 8
    $region5: #{tpu_custom_call.1} parent=1 // pred_fallthru
      _
    // Predicated region
    $region6: #{tpu_custom_call.1} parent=1 // pred_check
      _
    $region7: #{tpu_custom_call.1} parent=1 // pred_check_branch
      %31 = sbr.rel (0) target = $region9
    $region8: #{tpu_custom_call.1} parent=1 // pred_region
      %s33 = ssub.s32 256, 256
      %34 = vsyncadd [#allocation7], %s33
      %s35 = sshll.u32 [#allocation6], 4
      %s36 = int_to_ptr.vmem [resolvable:$true] %s35
      %41 = dma.hbm_to_vmem [thread:$0]  %s1, 256, %s36, [#allocation7], 128, 128, 8
    $region9: #{tpu_custom_call.1} parent=1 // pred_fallthru
      _
    // Predicated region
    $region10: #{tpu_custom_call.1} parent=1 // pred_check
      _
    $region11: #{tpu_custom_call.1} parent=1 // pred_check_branch
      %43 = sbr.rel (0) target = $region13
    $region12: #{tpu_custom_call.1} parent=1 // pred_region
      %s45 = ssub.s32 256, 256
      %46 = vsyncadd [#allocation7], %s45
      %s47 = sshll.u32 [#allocation8], 4
      %s48 = int_to_ptr.vmem [resolvable:$true] %s47
      %53 = dma.hbm_to_vmem [thread:$0]  %s2, 256, %s48, [#allocation7], 128, 128, 8
    $region13: #{tpu_custom_call.1} parent=1 // pred_fallthru
      _
    // Predicated region
    $region14: #{tpu_custom_call.1} parent=1 // pred_check
      _
    $region15: #{tpu_custom_call.1} parent=1 // pred_check_branch
      %55 = sbr.rel (0) target = $region17
    $region16: #{tpu_custom_call.1} parent=1 // pred_region
      %s57 = ssub.s32 1536, 1536
      %58 = vsyncadd [#allocation10], %s57
      %s59 = sshll.u32 [#allocation9], 4
      %s60 = int_to_ptr.vmem [resolvable:$true] %s59
      %65 = dma.hbm_to_vmem [thread:$0]  %s3, 1536, %s60, [#allocation10], 128, 128, 8
    $region17: #{tpu_custom_call.1} parent=1 // pred_fallthru
      _
    // Predicated region
    $region18: #{tpu_custom_call.1} parent=1 // pred_check
      _
    $region19: #{tpu_custom_call.1} parent=1 // pred_check_branch
      %67 = sbr.rel (0) target = $region21
    $region20: #{tpu_custom_call.1} parent=1 // pred_region
      _
    $region21: #{tpu_custom_call.1} parent=1 // pred_fallthru
      _
    // Predicated region
    $region22: #{tpu_custom_call.1} parent=1 // pred_check
      _
    $region23: #{tpu_custom_call.1} parent=1 // pred_check_branch
      %69 = sbr.rel (0) target = $region25
    $region24: #{tpu_custom_call.1} parent=1 // pred_region
      %70 = dma.done [#allocation4], 256
    $region25: #{tpu_custom_call.1} parent=1 // pred_fallthru
      _
    // Predicated region
    $region26: #{tpu_custom_call.1} parent=1 // pred_check
      _
    $region27: #{tpu_custom_call.1} parent=1 // pred_check_branch
      %72 = sbr.rel (0) target = $region29
    $region28: #{tpu_custom_call.1} parent=1 // pred_region
      %73 = dma.done [#allocation7], 256
    $region29: #{tpu_custom_call.1} parent=1 // pred_fallthru
      _
    // Predicated region
    $region30: #{tpu_custom_call.1} parent=1 // pred_check
      _
    $region31: #{tpu_custom_call.1} parent=1 // pred_check_branch
      %75 = sbr.rel (0) target = $region33
    $region32: #{tpu_custom_call.1} parent=1 // pred_region
      %76 = dma.done [#allocation7], 256
    $region33: #{tpu_custom_call.1} parent=1 // pred_fallthru
      _
    // Predicated region
    $region34: #{tpu_custom_call.1} parent=1 // pred_check
      _
    $region35: #{tpu_custom_call.1} parent=1 // pred_check_branch
      %78 = sbr.rel (0) target = $region37
    $region36: #{tpu_custom_call.1} parent=1 // pred_region
      %79 = dma.done [#allocation10], 1536
    $region37: #{tpu_custom_call.1} parent=1 // pred_fallthru
      _
    %p80 = scmp.eq.s32.totalorder 0, 0
    // Predicated region
    $region38: #{tpu_custom_call.1} parent=1 // pred_check
      %p81 = pneg %p80
    $region39: #{tpu_custom_call.1} parent=1 // pred_check_branch
      %83 = sbr.rel (%p81) target = $region41
    $region40: #{tpu_custom_call.1} parent=1 // pred_region
      %vm84 = vcmask 261120
      %85 = vst.msk [vmem:[#allocation2] sm:$0xff] %vm84, 0.0
      %86 = vst.msk [vmem:[#allocation2 + $0x8] sm:$0xff] %vm84, 0.0
      %87 = vst.msk [vmem:[#allocation2 + $0x10] sm:$0xff] %vm84, 0.0
      %88 = vst.msk [vmem:[#allocation2 + $0x18] sm:$0xff] %vm84, 0.0
      %89 = vst.msk [vmem:[#allocation2 + $0x20] sm:$0xff] %vm84, 0.0
      %90 = vst.msk [vmem:[#allocation2 + $0x28] sm:$0xff] %vm84, 0.0
    $region41: #{tpu_custom_call.1} parent=1 // pred_fallthru
      _
    %v91 = vld [vmem:[#allocation2] sm:$0xff]
    %v92 = vld [vmem:[#allocation2 + $0x8] sm:$0xff]
    %v93 = vld [vmem:[#allocation3] sm:$0xff]
    %v94 = vld [vmem:[#allocation3 + $0x8] sm:$0xff]
    %v95 = vld [vmem:[#allocation9] sm:$0xff]
    %v96 = vld [vmem:[#allocation9 + $0x8] sm:$0xff]
    %v97 = vld [vmem:[#allocation9 + $0x10] sm:$0xff]
    %v98 = vld [vmem:[#allocation9 + $0x18] sm:$0xff]
    %vm99 = vcmask 261120
    %v101 = vsel %vm99, %v93, 0
    %v104 = vsel %vm99, %v94, 0
    %106 = vmatprep.subr.mxu0 0.0
    %107 = vmatpush1.msra.mxu0 %v95
    %108 = vmatprep.subr.mxu0 0.0
    %109 = vmatpush1.msra.mxu0 %v96
    %110 = vmatprep.subr.mxu0 0.0
    %111 = vmatpush1.msra.mxu0 %v97
    %112 = vmatprep.subr.mxu0 0.0
    %113 = vmatpush1.msra.mxu0 %v98
    %114 = vmatprep.subr.mxu0 0.0
    %115 = vmatpush1.msra.mxu0 0.0
    %116 = vmatprep.subr.mxu0 0.0
    %117 = vmatpush1.msra.mxu0 0.0
    %118 = vmatprep.subr.mxu0 0.0
    %119 = vmatpush1.msra.mxu0 0.0
    %120 = vmatprep.subr.mxu0 0.0
    %121 = vmatpush1.msra.mxu0 0.0
    %122 = vmatprep.subr.mxu0 0.0
    %123 = vmatpush1.msra.mxu0 0.0
    %124 = vmatprep.subr.mxu0 0.0
    %125 = vmatpush1.msra.mxu0 0.0
    %126 = vmatprep.subr.mxu0 0.0
    %127 = vmatpush1.msra.mxu0 0.0
    %128 = vmatprep.subr.mxu0 0.0
    %129 = vmatpush1.msra.mxu0 0.0
    %130 = vmatprep.subr.mxu0 0.0
    %131 = vmatpush1.msra.mxu0 0.0
    %132 = vmatprep.subr.mxu0 0.0
    %133 = vmatpush1.msra.mxu0 0.0
    %134 = vmatprep.subr.mxu0 0.0
    %135 = vmatpush1.msra.mxu0 0.0
    %136 = vmatprep.subr.mxu0 0.0
    %137 = vmatpush1.msra.mxu0 0.0
    %138 = vmatprep.subr.mxu0 0.0
    %139 = vmatpush1.msra.mxu0 0.0
    %140 = vmatprep.subr.mxu0 0.0
    %141 = vmatpush1.msra.mxu0 0.0
    %142 = vmatprep.subr.mxu0 0.0
    %143 = vmatpush1.msra.mxu0 0.0
    %144 = vmatprep.subr.mxu0 0.0
    %145 = vmatpush1.msra.mxu0 0.0
    %146 = vmatprep.subr.mxu0 0.0
    %147 = vmatpush1.msra.mxu0 0.0
    %148 = vmatprep.subr.mxu0 0.0
    %149 = vmatpush1.msra.mxu0 0.0
    %150 = vmatprep.subr.mxu0 0.0
    %151 = vmatpush1.msra.mxu0 0.0
    %152 = vmatprep.subr.mxu0 0.0
    %153 = vmatpush1.msra.mxu0 0.0
    %154 = vmatprep.subr.mxu0 0.0
    %155 = vmatpush1.msra.mxu0 0.0
    %156 = vmatprep.subr.mxu0 0.0
    %157 = vmatpush1.msra.mxu0 0.0
    %158 = vmatprep.subr.mxu0 0.0
    %159 = vmatpush1.msra.mxu0 0.0
    %160 = vmatprep.subr.mxu0 0.0
    %161 = vmatpush1.msra.mxu0 0.0
    %162 = vmatprep.subr.mxu0 0.0
    %163 = vmatpush1.msra.mxu0 0.0
    %164 = vmatprep.subr.mxu0 0.0
    %165 = vmatpush1.msra.mxu0 0.0
    %166 = vmatprep.subr.mxu0 0.0
    %167 = vmatpush1.msra.mxu0 0.0
    %168 = vmatprep.subr.mxu0 0.0
    %169 = vmatpush1.msra.mxu0 0.0
    %170 = vmatprep.mubr.f32.mxu0 0.0
    %171 = vmatmul.mubr.f32.gmra.mrb[0].mxu0 %v101
    %v172 = vpop.f32.mrb[0].mxu0
    %v173 = vadd.f32 0.0, %v172
    %v174 = vpop.f32.mrb[0].mxu0
    %175 = vmatprep.mubr.f32.mxu0 0.0
    %176 = vmatmul.mubr.f32.gmra.mrb[0].mxu0 %v104
    %v177 = vpop.f32.mrb[0].mxu0
    %v178 = vadd.f32 0.0, %v177
    %v179 = vpop.f32.mrb[0].mxu0
    %180 = vdwg.mxu0
    %v181 = vadd.f32 %v91, %v173
    %v182 = vadd.f32 %v92, %v178
    %183 = vst.msk [vmem:[#allocation2] sm:$0xff] %vm99, %v181
    %184 = vst.msk [vmem:[#allocation2 + $0x8] sm:$0xff] %vm99, %v182
    %s185 = scalar_lea.vmem [#allocation2], 16
    %v186 = vld [vmem:[%s185] sm:$0xff]
    %v187 = vld [vmem:[%s185 + $0x8] sm:$0xff]
    %v188 = vld [vmem:[#allocation6] sm:$0xff]
    %v189 = vld [vmem:[#allocation6 + $0x8] sm:$0xff]
    %s190 = scalar_lea.vmem [#allocation9], 32
    %v191 = vld [vmem:[%s190] sm:$0xff]
    %v192 = vld [vmem:[%s190 + $0x8] sm:$0xff]
    %v193 = vld [vmem:[%s190 + $0x10] sm:$0xff]
    %v194 = vld [vmem:[%s190 + $0x18] sm:$0xff]
    %v196 = vsel %vm99, %v188, 0
    %v199 = vsel %vm99, %v189, 0
    %201 = vmatprep.subr.mxu0 0.0
    %202 = vmatpush1.msra.mxu0 %v191
    %203 = vmatprep.subr.mxu0 0.0
    %204 = vmatpush1.msra.mxu0 %v192
    %205 = vmatprep.subr.mxu0 0.0
    %206 = vmatpush1.msra.mxu0 %v193
    %207 = vmatprep.subr.mxu0 0.0
    %208 = vmatpush1.msra.mxu0 %v194
    %209 = vmatprep.subr.mxu0 0.0
    %210 = vmatpush1.msra.mxu0 0.0
    %211 = vmatprep.subr.mxu0 0.0
    %212 = vmatpush1.msra.mxu0 0.0
    %213 = vmatprep.subr.mxu0 0.0
    %214 = vmatpush1.msra.mxu0 0.0
    %215 = vmatprep.subr.mxu0 0.0
    %216 = vmatpush1.msra.mxu0 0.0
    %217 = vmatprep.subr.mxu0 0.0
    %218 = vmatpush1.msra.mxu0 0.0
    %219 = vmatprep.subr.mxu0 0.0
    %220 = vmatpush1.msra.mxu0 0.0
    %221 = vmatprep.subr.mxu0 0.0
    %222 = vmatpush1.msra.mxu0 0.0
    %223 = vmatprep.subr.mxu0 0.0
    %224 = vmatpush1.msra.mxu0 0.0
    %225 = vmatprep.subr.mxu0 0.0
    %226 = vmatpush1.msra.mxu0 0.0
    %227 = vmatprep.subr.mxu0 0.0
    %228 = vmatpush1.msra.mxu0 0.0
    %229 = vmatprep.subr.mxu0 0.0
    %230 = vmatpush1.msra.mxu0 0.0
    %231 = vmatprep.subr.mxu0 0.0
    %232 = vmatpush1.msra.mxu0 0.0
    %233 = vmatprep.subr.mxu0 0.0
    %234 = vmatpush1.msra.mxu0 0.0
    %235 = vmatprep.subr.mxu0 0.0
    %236 = vmatpush1.msra.mxu0 0.0
    %237 = vmatprep.subr.mxu0 0.0
    %238 = vmatpush1.msra.mxu0 0.0
    %239 = vmatprep.subr.mxu0 0.0
    %240 = vmatpush1.msra.mxu0 0.0
    %241 = vmatprep.subr.mxu0 0.0
    %242 = vmatpush1.msra.mxu0 0.0
    %243 = vmatprep.subr.mxu0 0.0
    %244 = vmatpush1.msra.mxu0 0.0
    %245 = vmatprep.subr.mxu0 0.0
    %246 = vmatpush1.msra.mxu0 0.0
    %247 = vmatprep.subr.mxu0 0.0
    %248 = vmatpush1.msra.mxu0 0.0
    %249 = vmatprep.subr.mxu0 0.0
    %250 = vmatpush1.msra.mxu0 0.0
    %251 = vmatprep.subr.mxu0 0.0
    %252 = vmatpush1.msra.mxu0 0.0
    %253 = vmatprep.subr.mxu0 0.0
    %254 = vmatpush1.msra.mxu0 0.0
    %255 = vmatprep.subr.mxu0 0.0
    %256 = vmatpush1.msra.mxu0 0.0
    %257 = vmatprep.subr.mxu0 0.0
    %258 = vmatpush1.msra.mxu0 0.0
    %259 = vmatprep.subr.mxu0 0.0
    %260 = vmatpush1.msra.mxu0 0.0
    %261 = vmatprep.subr.mxu0 0.0
    %262 = vmatpush1.msra.mxu0 0.0
    %263 = vmatprep.subr.mxu0 0.0
    %264 = vmatpush1.msra.mxu0 0.0
    %265 = vmatprep.mubr.f32.mxu0 0.0
    %266 = vmatmul.mubr.f32.gmra.mrb[0].mxu0 %v196
    %v267 = vpop.f32.mrb[0].mxu0
    %v268 = vadd.f32 0.0, %v267
    %v269 = vpop.f32.mrb[0].mxu0
    %270 = vmatprep.mubr.f32.mxu0 0.0
    %271 = vmatmul.mubr.f32.gmra.mrb[0].mxu0 %v199
    %v272 = vpop.f32.mrb[0].mxu0
    %v273 = vadd.f32 0.0, %v272
    %v274 = vpop.f32.mrb[0].mxu0
    %275 = vdwg.mxu0
    %v276 = vadd.f32 %v186, %v268
    %v277 = vadd.f32 %v187, %v273
    %278 = vst.msk [vmem:[%s185] sm:$0xff] %vm99, %v276
    %279 = vst.msk [vmem:[%s185 + $0x8] sm:$0xff] %vm99, %v277
    %s280 = scalar_lea.vmem [#allocation2], 32
    %v281 = vld [vmem:[%s280] sm:$0xff]
    %v282 = vld [vmem:[%s280 + $0x8] sm:$0xff]
    %v283 = vld [vmem:[#allocation8] sm:$0xff]
    %v284 = vld [vmem:[#allocation8 + $0x8] sm:$0xff]
    %s285 = scalar_lea.vmem [#allocation9], 64
    %v286 = vld [vmem:[%s285] sm:$0xff]
    %v287 = vld [vmem:[%s285 + $0x8] sm:$0xff]
    %v288 = vld [vmem:[%s285 + $0x10] sm:$0xff]
    %v289 = vld [vmem:[%s285 + $0x18] sm:$0xff]
    %v291 = vsel %vm99, %v283, 0
    %v294 = vsel %vm99, %v284, 0
    %296 = vmatprep.subr.mxu0 0.0
    %297 = vmatpush1.msra.mxu0 %v286
    %298 = vmatprep.subr.mxu0 0.0
    %299 = vmatpush1.msra.mxu0 %v287
    %300 = vmatprep.subr.mxu0 0.0
    %301 = vmatpush1.msra.mxu0 %v288
    %302 = vmatprep.subr.mxu0 0.0
    %303 = vmatpush1.msra.mxu0 %v289
    %304 = vmatprep.subr.mxu0 0.0
    %305 = vmatpush1.msra.mxu0 0.0
    %306 = vmatprep.subr.mxu0 0.0
    %307 = vmatpush1.msra.mxu0 0.0
    %308 = vmatprep.subr.mxu0 0.0
    %309 = vmatpush1.msra.mxu0 0.0
    %310 = vmatprep.subr.mxu0 0.0
    %311 = vmatpush1.msra.mxu0 0.0
    %312 = vmatprep.subr.mxu0 0.0
    %313 = vmatpush1.msra.mxu0 0.0
    %314 = vmatprep.subr.mxu0 0.0
    %315 = vmatpush1.msra.mxu0 0.0
    %316 = vmatprep.subr.mxu0 0.0
    %317 = vmatpush1.msra.mxu0 0.0
    %318 = vmatprep.subr.mxu0 0.0
    %319 = vmatpush1.msra.mxu0 0.0
    %320 = vmatprep.subr.mxu0 0.0
    %321 = vmatpush1.msra.mxu0 0.0
    %322 = vmatprep.subr.mxu0 0.0
    %323 = vmatpush1.msra.mxu0 0.0
    %324 = vmatprep.subr.mxu0 0.0
    %325 = vmatpush1.msra.mxu0 0.0
    %326 = vmatprep.subr.mxu0 0.0
    %327 = vmatpush1.msra.mxu0 0.0
    %328 = vmatprep.subr.mxu0 0.0
    %329 = vmatpush1.msra.mxu0 0.0
    %330 = vmatprep.subr.mxu0 0.0
    %331 = vmatpush1.msra.mxu0 0.0
    %332 = vmatprep.subr.mxu0 0.0
    %333 = vmatpush1.msra.mxu0 0.0
    %334 = vmatprep.subr.mxu0 0.0
    %335 = vmatpush1.msra.mxu0 0.0
    %336 = vmatprep.subr.mxu0 0.0
    %337 = vmatpush1.msra.mxu0 0.0
    %338 = vmatprep.subr.mxu0 0.0
    %339 = vmatpush1.msra.mxu0 0.0
    %340 = vmatprep.subr.mxu0 0.0
    %341 = vmatpush1.msra.mxu0 0.0
    %342 = vmatprep.subr.mxu0 0.0
    %343 = vmatpush1.msra.mxu0 0.0
    %344 = vmatprep.subr.mxu0 0.0
    %345 = vmatpush1.msra.mxu0 0.0
    %346 = vmatprep.subr.mxu0 0.0
    %347 = vmatpush1.msra.mxu0 0.0
    %348 = vmatprep.subr.mxu0 0.0
    %349 = vmatpush1.msra.mxu0 0.0
    %350 = vmatprep.subr.mxu0 0.0
    %351 = vmatpush1.msra.mxu0 0.0
    %352 = vmatprep.subr.mxu0 0.0
    %353 = vmatpush1.msra.mxu0 0.0
    %354 = vmatprep.subr.mxu0 0.0
    %355 = vmatpush1.msra.mxu0 0.0
    %356 = vmatprep.subr.mxu0 0.0
    %357 = vmatpush1.msra.mxu0 0.0
    %358 = vmatprep.subr.mxu0 0.0
    %359 = vmatpush1.msra.mxu0 0.0
    %360 = vmatprep.mubr.f32.mxu0 0.0
    %361 = vmatmul.mubr.f32.gmra.mrb[0].mxu0 %v291
    %v362 = vpop.f32.mrb[0].mxu0
    %v363 = vadd.f32 0.0, %v362
    %v364 = vpop.f32.mrb[0].mxu0
    %365 = vmatprep.mubr.f32.mxu0 0.0
    %366 = vmatmul.mubr.f32.gmra.mrb[0].mxu0 %v294
    %v367 = vpop.f32.mrb[0].mxu0
    %v368 = vadd.f32 0.0, %v367
    %v369 = vpop.f32.mrb[0].mxu0
    %370 = vdwg.mxu0
    %v371 = vadd.f32 %v281, %v363
    %v372 = vadd.f32 %v282, %v368
    %373 = vst.msk [vmem:[%s280] sm:$0xff] %vm99, %v371
    %374 = vst.msk [vmem:[%s280 + $0x8] sm:$0xff] %vm99, %v372
    // Predicated region
    $region42: #{tpu_custom_call.1} parent=1 // pred_check
      %p375 = pneg %p80
    $region43: #{tpu_custom_call.1} parent=1 // pred_check_branch
      %377 = sbr.rel (%p375) target = $region45
    $region44: #{tpu_custom_call.1} parent=1 // pred_region
      %v378 = vld [vmem:[#allocation2] sm:$0xff]
      %v379 = vld [vmem:[#allocation2 + $0x8] sm:$0xff]
      %v380 = vld [vmem:[%s4] sm:$0x1]
      %v382 = vlaneseq
      %v383 = vshrl.u32 %v382, 7
      %v384 = vsub.s32 0, %v383
      %v385 = vrot.slane %v380, %v384
      %v387 = vadd.f32 %v378, %v385
      %v388 = vadd.f32 %v379, %v385
      %389 = vst.msk [vmem:[#allocation11] sm:$0xff] %vm99, %v387
      %390 = vst.msk [vmem:[#allocation11 + $0x8] sm:$0xff] %vm99, %v388
      %v391 = vld [vmem:[%s185] sm:$0xff]
      %v392 = vld [vmem:[%s185 + $0x8] sm:$0xff]
      %s393 = scalar_lea.vmem %s4, 1
      %v394 = vld [vmem:[%s393] sm:$0x1]
      %v396 = vlaneseq
      %v397 = vshrl.u32 %v396, 7
      %v398 = vsub.s32 0, %v397
      %v399 = vrot.slane %v394, %v398
      %v401 = vadd.f32 %v391, %v399
      %v402 = vadd.f32 %v392, %v399
      %v403 = vmul.f32 %v401, 0.35355338
      %v404 = vmul.f32 %v402, 0.35355338
      %405 = vst.msk [vmem:[#allocation12] sm:$0xff] %vm99, %v403
      %406 = vst.msk [vmem:[#allocation12 + $0x8] sm:$0xff] %vm99, %v404
      %v407 = vld [vmem:[%s280] sm:$0xff]
      %v408 = vld [vmem:[%s280 + $0x8] sm:$0xff]
      %s409 = scalar_lea.vmem %s4, 2
      %v410 = vld [vmem:[%s409] sm:$0x1]
      %v412 = vlaneseq
      %v413 = vshrl.u32 %v412, 7
      %v414 = vsub.s32 0, %v413
      %v415 = vrot.slane %v410, %v414
      %v417 = vadd.f32 %v407, %v415
      %v418 = vadd.f32 %v408, %v415
      %419 = vst.msk [vmem:[#allocation14] sm:$0xff] %vm99, %v417
      %420 = vst.msk [vmem:[#allocation14 + $0x8] sm:$0xff] %vm99, %v418
    $region45: #{tpu_custom_call.1} parent=1 // pred_fallthru
      _
    // Predicated region
    $region46: #{tpu_custom_call.1} parent=1 // pred_check
      _
    $region47: #{tpu_custom_call.1} parent=1 // pred_check_branch
      %422 = sbr.rel (0) target = $region49
    $region48: #{tpu_custom_call.1} parent=1 // pred_region
      %s424 = ssub.s32 256, 256
      %425 = vsyncadd [#allocation5], %s424
      %s426 = sshll.u32 [#allocation11], 4
      %s427 = int_to_ptr.vmem [resolvable:$true] %s426
      %432 = dma.vmem_to_hbm [thread:$0]  %s427, 256, %s5, [#allocation5], 128, 128, 8
    $region49: #{tpu_custom_call.1} parent=1 // pred_fallthru
      _
    // Predicated region
    $region50: #{tpu_custom_call.1} parent=1 // pred_check
      _
    $region51: #{tpu_custom_call.1} parent=1 // pred_check_branch
      %434 = sbr.rel (0) target = $region53
    $region52: #{tpu_custom_call.1} parent=1 // pred_region
      %s436 = ssub.s32 256, 256
      %437 = vsyncadd [#allocation13], %s436
      %s438 = sshll.u32 [#allocation12], 4
      %s439 = int_to_ptr.vmem [resolvable:$true] %s438
      %444 = dma.vmem_to_hbm [thread:$0]  %s439, 256, %s6, [#allocation13], 128, 128, 8
    $region53: #{tpu_custom_call.1} parent=1 // pred_fallthru
      _
    // Predicated region
    $region54: #{tpu_custom_call.1} parent=1 // pred_check
      _
    $region55: #{tpu_custom_call.1} parent=1 // pred_check_branch
      %446 = sbr.rel (0) target = $region57
    $region56: #{tpu_custom_call.1} parent=1 // pred_region
      %s448 = ssub.s32 256, 256
      %449 = vsyncadd [#allocation13], %s448
      %s450 = sshll.u32 [#allocation14], 4
      %s451 = int_to_ptr.vmem [resolvable:$true] %s450
      %456 = dma.vmem_to_hbm [thread:$0]  %s451, 256, %s7, [#allocation13], 128, 128, 8
    $region57: #{tpu_custom_call.1} parent=1 // pred_fallthru
      _
    // Predicated region
    $region58: #{tpu_custom_call.1} parent=1 // pred_check
      _
    $region59: #{tpu_custom_call.1} parent=1 // pred_check_branch
      %458 = sbr.rel (0) target = $region61
    $region60: #{tpu_custom_call.1} parent=1 // pred_region
      %459 = dma.done [#allocation5], 256
    $region61: #{tpu_custom_call.1} parent=1 // pred_fallthru
      _
    // Predicated region
    $region62: #{tpu_custom_call.1} parent=1 // pred_check
      _
    $region63: #{tpu_custom_call.1} parent=1 // pred_check_branch
      %461 = sbr.rel (0) target = $region65
    $region64: #{tpu_custom_call.1} parent=1 // pred_region
      %462 = dma.done [#allocation13], 256
    $region65: #{tpu_custom_call.1} parent=1 // pred_fallthru
      _
    // Predicated region
    $region66: #{tpu_custom_call.1} parent=1 // pred_check
      _
    $region67: #{tpu_custom_call.1} parent=1 // pred_check_branch
      %464 = sbr.rel (0) target = $region69
    $region68: #{tpu_custom_call.1} parent=1 // pred_region
      %465 = dma.done [#allocation13], 256
    $region69: #{tpu_custom_call.1} parent=1 // pred_fallthru
      _
    %466 = vsyncpa [#allocation4], 1
    %467 = vsyncpa [#allocation7], 1
    %468 = vsyncpa [#allocation10], 1
    %469 = vsyncpa [#allocation5], 1
    %470 = vsyncpa [#allocation13], 1

</llo_original>
